<compile_context>
chip_gen: v5e
topology: v5e:2x2
jax: 0.10.0
libtpu: 0.0.40
codegen_flags: <defaults>
</compile_context>

<pallas_src>
import functools

import jax
import jax.numpy as jnp
from jax.experimental import pallas as pl
from jax.experimental.pallas import tpu as pltpu


def _round_up(x, m):
    return ((x + m - 1) // m) * m


def _cdiv(a, b):
    return (a + b - 1) // b


def _mlp_kernel(x_ref, w1_ref, b1_ref, w2_ref, b2_ref, o_ref):
    # Hidden layer: (TB, 11) bf16 @ (11, 256) bf16 -> f32, then bias + ReLU in f32.
    h = jnp.dot(x_ref[...], w1_ref[...], preferred_element_type=jnp.float32)
    h = jnp.maximum(h + b1_ref[...], 0.0)

    # Output layer: (TB, 256) bf16 @ (256, 8) bf16 -> f32 logits.
    logits = jnp.dot(h.astype(jnp.bfloat16), w2_ref[...],
                     preferred_element_type=jnp.float32)
    logits = logits + b2_ref[...]   # padded lanes carry -1e30 -> exp() == 0

    # Numerically stable softmax along the (8-wide) lane axis, exact divide so
    # rows sum to 1 to f32 precision (matches F.softmax(dim=-1)).
    m = jnp.max(logits, axis=-1, keepdims=True)
    e = jnp.exp(logits - m)
    denom = jnp.sum(e, axis=-1, keepdims=True)
    o_ref[...] = (e / denom).astype(o_ref.dtype)


def prepare_params(w1, b1, w2, b2):
    """Pad + cast weights ONCE (hoisted out of the per-call forward path).

    w1 : (11, 200)  f32  (transposed PyTorch weight)
    b1 : (1, 200)   f32
    w2 : (200, 3)   f32  (transposed PyTorch weight)
    b2 : (1, 3)     f32
    """
    d_in, d_hid = w1.shape
    d_out = w2.shape[1]

    d_hid_p = _round_up(d_hid, 128)   # 200 -> 256 (two dense lane tiles)
    d_out_p = _round_up(d_out, 8)     # 3   -> 8   (full-array lane block)

    # bf16 matmul operands; zero hidden padding is exact (ReLU(0)=0 hits zero
    # rows of w2).  Biases stay f32 for the elementwise/softmax path.
    w1p = jnp.pad(w1, ((0, 0), (0, d_hid_p - d_hid))).astype(jnp.bfloat16)
    b1p = jnp.pad(b1, ((0, 0), (0, d_hid_p - d_hid))).astype(jnp.float32)
    w2p = jnp.pad(w2, ((0, d_hid_p - d_hid), (0, d_out_p - d_out))).astype(jnp.bfloat16)
    # Padded output lanes get a huge negative bias so exp() sends them to 0
    # and they do not corrupt the softmax denominator (kept in f32).
    b2p = jnp.pad(b2, ((0, 0), (0, d_out_p - d_out)),
                  constant_values=-1e30).astype(jnp.float32)
    return w1p, b1p, w2p, b2p


@functools.partial(jax.jit, static_argnames=("d_out", "tb"))
def linear_qnet_forward(x, w1p, b1p, w2p, b2p, *, d_out=3, tb=2048):
    """Forward pass of Linear_QNet as a single batch-tiled Pallas kernel.

    x : (B, 11) f32; w1p/b1p/w2p/b2p from prepare_params().
    returns: (B, d_out) f32 softmax probabilities.
    """
    B, d_in = x.shape
    d_hid_p = w1p.shape[1]   # 256
    d_out_p = w2p.shape[1]   # 8

    # ---- balanced batch tiling -------------------------------------------
    n_tiles = max(1, _cdiv(B, tb))
    # v7x megacore: give both TensorCores work once the batch is big enough.
    if n_tiles == 1 and B >= 1024:
        n_tiles = 2
    tb_eff = _round_up(_cdiv(B, n_tiles), 16)   # 16-row multiple: bf16-safe
    b_pad = n_tiles * tb_eff

    xp = jnp.pad(x.astype(jnp.bfloat16), ((0, b_pad - B), (0, 0)))

    cost = pl.CostEstimate(
        flops=2 * b_pad * (d_in * d_hid_p + d_hid_p * d_out_p),
        transcendentals=b_pad * d_out_p,                      # exp
        bytes_accessed=(2 * b_pad * d_in                      # x   (bf16)
                        + 4 * b_pad * d_out_p                 # out (f32)
                        + 2 * (d_in * d_hid_p + d_hid_p * d_out_p)   # weights
                        + 4 * (d_hid_p + d_out_p)),                   # biases
    )

    out = pl.pallas_call(
        _mlp_kernel,
        out_shape=jax.ShapeDtypeStruct((b_pad, d_out_p), jnp.float32),
        grid=(n_tiles,),
        in_specs=[
            pl.BlockSpec((tb_eff, d_in), lambda i: (i, 0)),     # x: pipelined
            pl.BlockSpec((d_in, d_hid_p), lambda i: (0, 0)),    # weights stay
            pl.BlockSpec((1, d_hid_p), lambda i: (0, 0)),       # VMEM-resident
            pl.BlockSpec((d_hid_p, d_out_p), lambda i: (0, 0)),
            pl.BlockSpec((1, d_out_p), lambda i: (0, 0)),
        ],
        out_specs=pl.BlockSpec((tb_eff, d_out_p), lambda i: (i, 0)),
        compiler_params=pltpu.CompilerParams(
            dimension_semantics=("parallel",),      # megacore sharding on v7x
            vmem_limit_bytes=32 * 1024 * 1024,      # safe on 64 MiB v7x VMEM
        ),
        cost_estimate=cost,
    )(xp, w1p, b1p, w2p, b2p)

    # Strip batch padding and the padded output lanes.
    return out[:B, :d_out]


def init_params(key, layers=(11, 200, 3)):
    """Deterministic init mimicking nn.Linear default (uniform(-1/sqrt(in), 1/sqrt(in)))."""
    params = []
    for i in range(len(layers) - 1):
        fan_in, fan_out = layers[i], layers[i + 1]
        key, kw, kb = jax.random.split(key, 3)
        bound = 1.0 / jnp.sqrt(jnp.float32(fan_in))
        # stored as (in, out) == PyTorch weight.T
        w = jax.random.uniform(kw, (fan_in, fan_out), jnp.float32, -bound, bound)
        b = jax.random.uniform(kb, (1, fan_out), jnp.float32, -bound, bound)
        params.append((w, b))
    return params


def _reference_forward(x, w1, b1, w2, b2):
    h = jnp.maximum(x @ w1 + b1, 0.0)
    logits = h @ w2 + b2
    return jax.nn.softmax(logits, axis=-1)


if __name__ == "__main__":
    key = jax.random.PRNGKey(0)
    key, kx = jax.random.split(key)

    batch = 2
    layers = (11, 200, 3)
    x = jax.random.normal(kx, (batch, layers[0]), jnp.float32)

    (w1, b1), (w2, b2) = init_params(key, layers)

    # Pad/cast the weights once (hoisted out of the per-call path).
    w1p, b1p, w2p, b2p = prepare_params(w1, b1, w2, b2)

    out = linear_qnet_forward(x, w1p, b1p, w2p, b2p, d_out=layers[-1])
    out = jax.block_until_ready(out)

    # sanity: shape, softmax rows sum to 1 (exact divide -> f32-tight), and
    # match the pure-f32 JAX reference within bf16-matmul tolerance.
    assert out.shape == (batch, layers[-1])
    assert jnp.allclose(jnp.sum(out, axis=-1), 1.0, atol=1e-4), jnp.sum(out, axis=-1)
    ref = _reference_forward(x, w1, b1, w2, b2)
    assert jnp.allclose(out, ref, atol=2e-2), (out, ref)

    print("KERNEL_OK")
</pallas_src>

<mosaic_0001>
module attributes {stable_mosaic.version = 11 : i64} {
  func.func @_mlp_kernel(%arg0: i32, %arg1: memref<16x11xbf16, #tpu.memory_space<vmem>>, %arg2: memref<11x256xbf16, #tpu.memory_space<vmem>>, %arg3: memref<1x256xf32, #tpu.memory_space<vmem>>, %arg4: memref<256x8xbf16, #tpu.memory_space<vmem>>, %arg5: memref<1x8xf32, #tpu.memory_space<vmem>>, %arg6: memref<16x8xf32, #tpu.memory_space<vmem>>) attributes {dimension_semantics = [#tpu.dimension_semantics<parallel>], iteration_bounds = array<i64: 1>, scalar_prefetch = 0 : i64, scratch_operands = 0 : i64, tpu.core_type = #tpu.core_type<tc>, window_params = [{transform_indices = @transform_0, window_bounds = array<i64: 16, 11>}, {pipeline_mode = #tpu.pipeline_mode<synchronous>, transform_indices = @transform_1, window_bounds = array<i64: 11, 256>}, {pipeline_mode = #tpu.pipeline_mode<synchronous>, transform_indices = @transform_2, window_bounds = array<i64: 1, 256>}, {pipeline_mode = #tpu.pipeline_mode<synchronous>, transform_indices = @transform_3, window_bounds = array<i64: 256, 8>}, {pipeline_mode = #tpu.pipeline_mode<synchronous>, transform_indices = @transform_4, window_bounds = array<i64: 1, 8>}, {transform_indices = @transform_5, window_bounds = array<i64: 16, 8>}]} {
    %c0 = arith.constant 0 : index
    %c0_0 = arith.constant 0 : index
    %0 = vector.load %arg1[%c0, %c0_0] : memref<16x11xbf16, #tpu.memory_space<vmem>>, vector<16x11xbf16>
    %c0_1 = arith.constant 0 : index
    %c0_2 = arith.constant 0 : index
    %1 = vector.load %arg2[%c0_1, %c0_2] : memref<11x256xbf16, #tpu.memory_space<vmem>>, vector<11x256xbf16>
    %cst = arith.constant dense<0.000000e+00> : vector<16x256xf32>
    %2 = tpu.matmul %0, %1, %cst {dimension_numbers = #tpu.dot_dimension_numbers<[1], [0], [0], [1], [0, 0, 1, 1], [], []>} : vector<16x11xbf16>, vector<11x256xbf16>, vector<16x256xf32> -> vector<16x256xf32>
    %c0_3 = arith.constant 0 : index
    %c0_4 = arith.constant 0 : index
    %3 = vector.load %arg3[%c0_3, %c0_4] : memref<1x256xf32, #tpu.memory_space<vmem>>, vector<1x256xf32>
    %4 = vector.broadcast %3 : vector<1x256xf32> to vector<16x256xf32>
    %5 = arith.addf %2, %4 : vector<16x256xf32>
    %cst_5 = arith.constant 0.000000e+00 : f32
    %6 = vector.broadcast %cst_5 : f32 to vector<16x256xf32>
    %7 = arith.maximumf %5, %6 : vector<16x256xf32>
    %8 = arith.truncf %7 : vector<16x256xf32> to vector<16x256xbf16>
    %c0_6 = arith.constant 0 : index
    %c0_7 = arith.constant 0 : index
    %9 = vector.load %arg4[%c0_6, %c0_7] : memref<256x8xbf16, #tpu.memory_space<vmem>>, vector<256x8xbf16>
    %cst_8 = arith.constant dense<0.000000e+00> : vector<16x8xf32>
    %10 = tpu.matmul %8, %9, %cst_8 {dimension_numbers = #tpu.dot_dimension_numbers<[1], [0], [0], [1], [0, 0, 1, 1], [], []>} : vector<16x256xbf16>, vector<256x8xbf16>, vector<16x8xf32> -> vector<16x8xf32>
    %c0_9 = arith.constant 0 : index
    %c0_10 = arith.constant 0 : index
    %11 = vector.load %arg5[%c0_9, %c0_10] : memref<1x8xf32, #tpu.memory_space<vmem>>, vector<1x8xf32>
    %12 = vector.broadcast %11 : vector<1x8xf32> to vector<16x8xf32>
    %13 = arith.addf %10, %12 : vector<16x8xf32>
    %cst_11 = arith.constant dense<0xFF800000> : vector<16xf32>
    %14 = vector.multi_reduction <maximumf>, %13, %cst_11 [1] : vector<16x8xf32> to vector<16xf32>
    %15 = vector.shape_cast %14 : vector<16xf32> to vector<16x1xf32>
    %16 = vector.broadcast %15 : vector<16x1xf32> to vector<16x8xf32>
    %17 = arith.subf %13, %16 : vector<16x8xf32>
    %18 = math.exp %17 : vector<16x8xf32>
    %cst_12 = arith.constant dense<0.000000e+00> : vector<16xf32>
    %19 = vector.multi_reduction <add>, %18, %cst_12 [1] : vector<16x8xf32> to vector<16xf32>
    %20 = vector.shape_cast %19 : vector<16xf32> to vector<16x1xf32>
    %21 = vector.broadcast %20 : vector<16x1xf32> to vector<16x8xf32>
    %22 = arith.divf %18, %21 : vector<16x8xf32>
    %c0_13 = arith.constant 0 : index
    %c0_14 = arith.constant 0 : index
    %23 = vector.load %arg6[%c0_13, %c0_14] : memref<16x8xf32, #tpu.memory_space<vmem>>, vector<16x8xf32>
    tpu.vector_store %arg6[%c0_13, %c0_14], %22 {strides = array<i32>} : memref<16x8xf32, #tpu.memory_space<vmem>>, vector<16x8xf32>,
    return
  }
  func.func @transform_0(%arg0: i32) -> (i32, i32) {
    %c0_i32 = arith.constant 0 : i32
    %c0_i32_0 = arith.constant 0 : i32
    return %arg0, %c0_i32 : i32, i32
  }
  func.func @transform_1(%arg0: i32) -> (i32, i32) {
    %c0_i32 = arith.constant 0 : i32
    %c0_i32_0 = arith.constant 0 : i32
    %c0_i32_1 = arith.constant 0 : i32
    return %c0_i32, %c0_i32_0 : i32, i32
  }
  func.func @transform_2(%arg0: i32) -> (i32, i32) {
    %c0_i32 = arith.constant 0 : i32
    %c0_i32_0 = arith.constant 0 : i32
    %c0_i32_1 = arith.constant 0 : i32
    return %c0_i32, %c0_i32_0 : i32, i32
  }
  func.func @transform_3(%arg0: i32) -> (i32, i32) {
    %c0_i32 = arith.constant 0 : i32
    %c0_i32_0 = arith.constant 0 : i32
    %c0_i32_1 = arith.constant 0 : i32
    return %c0_i32, %c0_i32_0 : i32, i32
  }
  func.func @transform_4(%arg0: i32) -> (i32, i32) {
    %c0_i32 = arith.constant 0 : i32
    %c0_i32_0 = arith.constant 0 : i32
    %c0_i32_1 = arith.constant 0 : i32
    return %c0_i32, %c0_i32_0 : i32, i32
  }
  func.func @transform_5(%arg0: i32) -> (i32, i32) {
    %c0_i32 = arith.constant 0 : i32
    %c0_i32_0 = arith.constant 0 : i32
    return %arg0, %c0_i32 : i32, i32
  }
}

</mosaic_0001>

<llo_original>
// kernel: linear_qnet_forward.1
$region0: #{linear_qnet_forward.1}
  #allocation0 [shape = 'u32[]', space=smem, size = 0x4, offset = 0x4, fixed_abs, tag = 'smem constant byte address 0x4 - core index']
  #allocation1 [shape = 'u32[72,128]{1,0:T(1,128)}', space=vmem, size = 0x9000, scoped, tag = 'internal scratch']
  %s0 = inlined_call_operand.vmem [shape: bf16[16,11], index: 0, kind: input, shape index: {}]
  %s1 = inlined_call_operand.vmem [shape: bf16[11,256], index: 1, kind: input, shape index: {}]
  %s2 = inlined_call_operand.vmem [shape: f32[1,256], index: 2, kind: input, shape index: {}]
  %s3 = inlined_call_operand.vmem [shape: bf16[256,8], index: 3, kind: input, shape index: {}]
  %s4 = inlined_call_operand.vmem [shape: f32[1,8], index: 4, kind: input, shape index: {}]
  %s5 = inlined_call_operand.vmem [shape: f32[16,8], index: 5, kind: output, shape index: {}]
  %s6 = sld [smem:[#allocation0]]
  $region30: #{linear_qnet_forward.1} parent=0
    _
  %s8 = ssub.s32 1, %s6
  %s9 = scalar_select 0, %s8, %s6
  // Predicated region
  $region2: #{linear_qnet_forward.1} parent=0 // pred_check
    _
  $region3: #{linear_qnet_forward.1} parent=0 // pred_check_branch
    %11 = sbr.rel (0) target = $region5
  $region4: #{linear_qnet_forward.1} parent=0 // pred_region
    _
  $region5: #{linear_qnet_forward.1} parent=0 // pred_fallthru
    _
  // Predicated region
  $region6: #{linear_qnet_forward.1} parent=0 // pred_check
    _
  $region7: #{linear_qnet_forward.1} parent=0 // pred_check_branch
    %13 = sbr.rel (0) target = $region9
  $region8: #{linear_qnet_forward.1} parent=0 // pred_region
    _
  $region9: #{linear_qnet_forward.1} parent=0 // pred_fallthru
    _
  // Predicated region
  $region10: #{linear_qnet_forward.1} parent=0 // pred_check
    _
  $region11: #{linear_qnet_forward.1} parent=0 // pred_check_branch
    %15 = sbr.rel (0) target = $region13
  $region12: #{linear_qnet_forward.1} parent=0 // pred_region
    _
  $region13: #{linear_qnet_forward.1} parent=0 // pred_fallthru
    _
  // Predicated region
  $region14: #{linear_qnet_forward.1} parent=0 // pred_check
    _
  $region15: #{linear_qnet_forward.1} parent=0 // pred_check_branch
    %17 = sbr.rel (0) target = $region17
  $region16: #{linear_qnet_forward.1} parent=0 // pred_region
    _
  $region17: #{linear_qnet_forward.1} parent=0 // pred_fallthru
    _
  // Predicated region
  $region18: #{linear_qnet_forward.1} parent=0 // pred_check
    _
  $region19: #{linear_qnet_forward.1} parent=0 // pred_check_branch
    %19 = sbr.rel (0) target = $region21
  $region20: #{linear_qnet_forward.1} parent=0 // pred_region
    _
  $region21: #{linear_qnet_forward.1} parent=0 // pred_fallthru
    _
  %v21 = vld [vmem:[%s0] sm:$0xf]
  %v22 = vld [vmem:[%s0 + $0x4] sm:$0xf]
  %v23 = vld [vmem:[%s1] sm:$0xff]
  %v24 = vld [vmem:[%s1 + $0x8] sm:$0x33]
  %v25 = vld [vmem:[%s2] sm:$0x3]
  %v27 = vperm.slane %v25, 0
  %v28 = vperm.slane %v25, 1
  %v33 = vunpack.c.l.b16 %v21
  %v34 = vunpack.c.l.b16 %v22
  %v35 = vpack.c.b16 %v34, %v33
  %v38 = vunpack.c.l.b16 %v23
  %v39 = vunpack.c.h.b16 %v23
  %v40 = vunpack.c.l.b16 %v24
  %v41 = vunpack.c.h.b16 %v24
  %v42 = vpack.c.b16 %v40, %v38
  %v43 = vpack.c.b16 %v41, %v39
  %vm44 = vcmask 89088
  %v46 = vsel %vm44, %v35, 0
  %vm48 = vcmask 1044480
  %vm49 = vcmask 1045504
  %v50 = vsel %vm48, 4294967295, 65535
  %v51 = vsel %vm49, %v50, 0
  %v53 = vand.u32 %v42, %v51
  %v56 = vand.u32 %v43, %v51
  %58 = vmatpush.bf16.msra.mxu0 0
  %59 = vmatpush.bf16.msra.mxu0 0
  %60 = vmatpush.bf16.msra.mxu0 0
  %61 = vmatpush.bf16.msra.mxu0 0
  %62 = vmatpush.bf16.msra.mxu0 0
  %63 = vmatpush.bf16.msra.mxu0 0
  %64 = vmatpush.bf16.msra.mxu0 0
  %65 = vmatpush.bf16.msra.mxu0 %v53
  %66 = vmatmul.bf16.gmra.mxu0 %v46
  %v67 = vpop.f32.mrf.mxu0
  %v68 = vadd.f32 %v27, %v67
  %v69 = vpop.f32.mrf.mxu0
  %v70 = vadd.f32 %v27, %v69
  %71 = vdwg.mxu0
  %72 = vmatpush.bf16.msra.mxu0 0
  %73 = vmatpush.bf16.msra.mxu0 0
  %74 = vmatpush.bf16.msra.mxu0 0
  %75 = vmatpush.bf16.msra.mxu0 0
  %76 = vmatpush.bf16.msra.mxu0 0
  %77 = vmatpush.bf16.msra.mxu0 0
  %78 = vmatpush.bf16.msra.mxu0 0
  %79 = vmatpush.bf16.msra.mxu0 %v56
  %80 = vmatmul.bf16.gmra.mxu0 %v46
  %v81 = vpop.f32.mrf.mxu0
  %v82 = vadd.f32 %v28, %v81
  %v83 = vpop.f32.mrf.mxu0
  %v84 = vadd.f32 %v28, %v83
  %85 = vdwg.mxu0
  %v86 = vmax.f32 %v68, 0.0
  %v87 = vmax.f32 %v82, 0.0
  %v88 = vmax.f32 %v70, 0.0
  %v89 = vmax.f32 %v84, 0.0
  %v90 = vpack.c.bf16 %v88, %v86
  %v91 = vpack.c.bf16 %v89, %v87
  %v92 = vld [vmem:[%s3] sm:$0xf]
  %v93 = vld [vmem:[%s3 + $0x4] sm:$0xf]
  %v94 = vld [vmem:[%s3 + $0x8] sm:$0xf]
  %v95 = vld [vmem:[%s3 + $0xc] sm:$0xf]
  %v96 = vld [vmem:[%s3 + $0x10] sm:$0xf]
  %v97 = vld [vmem:[%s3 + $0x14] sm:$0xf]
  %v98 = vld [vmem:[%s3 + $0x18] sm:$0xf]
  %v99 = vld [vmem:[%s3 + $0x1c] sm:$0xf]
  %v100 = vld [vmem:[%s3 + $0x20] sm:$0xf]
  %v101 = vld [vmem:[%s3 + $0x24] sm:$0xf]
  %v102 = vld [vmem:[%s3 + $0x28] sm:$0xf]
  %v103 = vld [vmem:[%s3 + $0x2c] sm:$0xf]
  %v104 = vld [vmem:[%s3 + $0x30] sm:$0xf]
  %v105 = vld [vmem:[%s3 + $0x34] sm:$0xf]
  %v106 = vld [vmem:[%s3 + $0x38] sm:$0xf]
  %v107 = vld [vmem:[%s3 + $0x3c] sm:$0xf]
  %v108 = vld [vmem:[%s3 + $0x40] sm:$0xf]
  %v109 = vld [vmem:[%s3 + $0x44] sm:$0xf]
  %v110 = vld [vmem:[%s3 + $0x48] sm:$0xf]
  %v111 = vld [vmem:[%s3 + $0x4c] sm:$0xf]
  %v112 = vld [vmem:[%s3 + $0x50] sm:$0xf]
  %v113 = vld [vmem:[%s3 + $0x54] sm:$0xf]
  %v114 = vld [vmem:[%s3 + $0x58] sm:$0xf]
  %v115 = vld [vmem:[%s3 + $0x5c] sm:$0xf]
  %v116 = vld [vmem:[%s3 + $0x60] sm:$0xf]
  %v117 = vld [vmem:[%s3 + $0x64] sm:$0xf]
  %v118 = vld [vmem:[%s3 + $0x68] sm:$0xf]
  %v119 = vld [vmem:[%s3 + $0x6c] sm:$0xf]
  %v120 = vld [vmem:[%s3 + $0x70] sm:$0xf]
  %v121 = vld [vmem:[%s3 + $0x74] sm:$0xf]
  %v122 = vld [vmem:[%s3 + $0x78] sm:$0xf]
  %v123 = vld [vmem:[%s3 + $0x7c] sm:$0xf]
  %v124 = vld [vmem:[%s4] sm:$0x1]
  %v126 = vperm.slane %v124, 0
  %v160 = vunpack.c.l.b16 %v92
  %v161 = vunpack.c.l.b16 %v93
  %v162 = vunpack.c.l.b16 %v94
  %v163 = vunpack.c.l.b16 %v95
  %v164 = vunpack.c.l.b16 %v96
  %v165 = vunpack.c.l.b16 %v97
  %v166 = vunpack.c.l.b16 %v98
  %v167 = vunpack.c.l.b16 %v99
  %v168 = vunpack.c.l.b16 %v100
  %v169 = vunpack.c.l.b16 %v101
  %v170 = vunpack.c.l.b16 %v102
  %v171 = vunpack.c.l.b16 %v103
  %v172 = vunpack.c.l.b16 %v104
  %v173 = vunpack.c.l.b16 %v105
  %v174 = vunpack.c.l.b16 %v106
  %v175 = vunpack.c.l.b16 %v107
  %v176 = vunpack.c.l.b16 %v108
  %v177 = vunpack.c.l.b16 %v109
  %v178 = vunpack.c.l.b16 %v110
  %v179 = vunpack.c.l.b16 %v111
  %v180 = vunpack.c.l.b16 %v112
  %v181 = vunpack.c.l.b16 %v113
  %v182 = vunpack.c.l.b16 %v114
  %v183 = vunpack.c.l.b16 %v115
  %v184 = vunpack.c.l.b16 %v116
  %v185 = vunpack.c.l.b16 %v117
  %v186 = vunpack.c.l.b16 %v118
  %v187 = vunpack.c.l.b16 %v119
  %v188 = vunpack.c.l.b16 %v120
  %v189 = vunpack.c.l.b16 %v121
  %v190 = vunpack.c.l.b16 %v122
  %v191 = vunpack.c.l.b16 %v123
  %v192 = vpack.c.b16 %v161, %v160
  %v193 = vpack.c.b16 %v163, %v162
  %v194 = vpack.c.b16 %v165, %v164
  %v195 = vpack.c.b16 %v167, %v166
  %v196 = vpack.c.b16 %v169, %v168
  %v197 = vpack.c.b16 %v171, %v170
  %v198 = vpack.c.b16 %v173, %v172
  %v199 = vpack.c.b16 %v175, %v174
  %v200 = vpack.c.b16 %v177, %v176
  %v201 = vpack.c.b16 %v179, %v178
  %v202 = vpack.c.b16 %v181, %v180
  %v203 = vpack.c.b16 %v183, %v182
  %v204 = vpack.c.b16 %v185, %v184
  %v205 = vpack.c.b16 %v187, %v186
  %v206 = vpack.c.b16 %v189, %v188
  %v207 = vpack.c.b16 %v191, %v190
  %224 = vmatpush.bf16.msra.mxu0 %v199
  %225 = vmatpush.bf16.msra.mxu0 %v198
  %226 = vmatpush.bf16.msra.mxu0 %v197
  %227 = vmatpush.bf16.msra.mxu0 %v196
  %228 = vmatpush.bf16.msra.mxu0 %v195
  %229 = vmatpush.bf16.msra.mxu0 %v194
  %230 = vmatpush.bf16.msra.mxu0 %v193
  %231 = vmatpush.bf16.msra.mxu0 %v192
  %232 = vmatmul.bf16.gmra.mxu0 %v90
  %v233 = vpop.f32.mrf.mxu0
  %v234 = vadd.f32 %v126, %v233
  %v235 = vpop.f32.mrf.mxu0
  %v236 = vadd.f32 %v126, %v235
  %237 = vdwg.mxu0
  %238 = vmatpush.bf16.msra.mxu0 %v207
  %239 = vmatpush.bf16.msra.mxu0 %v206
  %240 = vmatpush.bf16.msra.mxu0 %v205
  %241 = vmatpush.bf16.msra.mxu0 %v204
  %242 = vmatpush.bf16.msra.mxu0 %v203
  %243 = vmatpush.bf16.msra.mxu0 %v202
  %244 = vmatpush.bf16.msra.mxu0 %v201
  %245 = vmatpush.bf16.msra.mxu0 %v200
  %246 = vmatmul.bf16.gmra.mxu0 %v91
  %v247 = vpop.f32.mrf.mxu0
  %v248 = vadd.f32 %v234, %v247
  %v249 = vpop.f32.mrf.mxu0
  %v250 = vadd.f32 %v236, %v249
  %251 = vdwg.mxu0
  %vm252 = vcmask 64512
  %v253 = vsel %vm252, %v248, -inf
  %254 = vmax.xlane.f32.xlu0 %v253
  %v255 = vpop.xlane.xlu0 %254
  %v256 = vsel %vm252, %v250, -inf
  %257 = vmax.xlane.f32.xlu0 %v256
  %v258 = vpop.xlane.xlu0 %257
  %v259 = vsub.f32 %v248, %v255
  %v260 = vsub.f32 %v250, %v258
  %v261 = vmul.f32 %v259, 1.442695
  %v262 = vpow.pop %v261
  %v263 = vmul.f32 %v260, 1.442695
  %v264 = vpow.pop %v263
  %v265 = vsel %vm252, %v262, 0.0
  %266 = vadd.xlane.f32.xlu0 %v265
  %v267 = vpop.xlane.xlu0 %266
  %v268 = vsel %vm252, %v264, 0.0
  %269 = vadd.xlane.f32.xlu0 %v268
  %v270 = vpop.xlane.xlu0 %269
  %v271 = vrcp.pop %v267
  %v272 = vmul.f32 %v267, %v271
  %v273 = vsub.f32 1.0, %v272
  %v274 = vmul.f32 %v271, %v273
  %v275 = vadd.f32 %v271, %v274
  %vm276 = vweird.f32 %v267
  %vm277 = vweird.f32 %v271
  %vm278 = vmor %vm276, %vm277
  %v279 = vsel %vm278, %v271, %v275
  %v280 = vand.u32 2147483647, %v267
  %vm281 = vcmp.eq.f32.partialorder %v280, 8.507059e+37
  %v282 = vand.u32 %v267, 2147483648
  %v283 = vor.u32 1.1754944e-38, %v282
  %v284 = vsel %vm281, %v283, %v279
  %v285 = vmul.f32 %v262, %v284
  %v286 = vrcp.pop %v270
  %v287 = vmul.f32 %v270, %v286
  %v288 = vsub.f32 1.0, %v287
  %v289 = vmul.f32 %v286, %v288
  %v290 = vadd.f32 %v286, %v289
  %vm291 = vweird.f32 %v270
  %vm292 = vweird.f32 %v286
  %vm293 = vmor %vm291, %vm292
  %v294 = vsel %vm293, %v286, %v290
  %v295 = vand.u32 2147483647, %v270
  %vm296 = vcmp.eq.f32.partialorder %v295, 8.507059e+37
  %v297 = vand.u32 %v270, 2147483648
  %v298 = vor.u32 1.1754944e-38, %v297
  %v299 = vsel %vm296, %v298, %v294
  %v300 = vmul.f32 %v264, %v299
  %301 = vst.msk [vmem:[%s5] sm:$0xff] %vm252, %v285
  %302 = vst.msk [vmem:[%s5 + $0x8] sm:$0xff] %vm252, %v300
  // Predicated region
  $region22: #{linear_qnet_forward.1} parent=0 // pred_check
    _
  $region23: #{linear_qnet_forward.1} parent=0 // pred_check_branch
    %304 = sbr.rel (0) target = $region25
  $region24: #{linear_qnet_forward.1} parent=0 // pred_region
    _
  $region25: #{linear_qnet_forward.1} parent=0 // pred_fallthru
    _
  // Predicated region
  $region26: #{linear_qnet_forward.1} parent=0 // pred_check
    _
  $region27: #{linear_qnet_forward.1} parent=0 // pred_check_branch
    %306 = sbr.rel (0) target = $region29
  $region28: #{linear_qnet_forward.1} parent=0 // pred_region
    _
  $region29: #{linear_qnet_forward.1} parent=0 // pred_fallthru
    _

</llo_original>
